<compile_context>
chip_gen: v7x
topology: tpu7x:2x2x1
jax: 0.10.0
libtpu: 0.0.40
codegen_flags: <defaults>
</compile_context>

<pallas_src>
import jax
import jax.numpy as jnp
from jax.experimental import pallas as pl
from jax.experimental.pallas import tpu as pltpu

EPS = 1e-5
HIDDEN = 512
OUT_F = 1


def _round_up(x, m):
    return (x + m - 1) // m * m


# ---------------------------------------------------------------------------
# Kernel: out = relu(x @ W1' + b1') @ W2' + b2'   (BatchNorms pre-folded)
# Grid: (batch tiles, K tiles over the flattened feature dim)
# ---------------------------------------------------------------------------
def head_kernel(x_ref, w1_ref, bl1_ref, w2r_ref, bl2_ref, out_ref, acc_ref):
    k = pl.program_id(1)

    @pl.when(k == 0)
    def _():
        acc_ref[...] = jnp.zeros_like(acc_ref)

    # First linear layer, streamed over K on the MXU (bf16 in, f32 accumulate).
    acc_ref[...] += jnp.dot(x_ref[...], w1_ref[...],
                            preferred_element_type=jnp.float32)

    @pl.when(k == pl.num_programs(1) - 1)
    def _():
        h = jnp.maximum(acc_ref[...] + bl1_ref[...], 0.0)        # (tb, 512) f32
        # Second linear (512 -> 1) as VPU multiply + lane reduction.
        out = jnp.sum(h * w2r_ref[...], axis=-1, keepdims=True) + bl2_ref[...]
        out_ref[...] = out.astype(out_ref.dtype)


def _fold_params(params):
    """Fold eval-mode BatchNorm1d layers into the adjacent Linear layers."""
    (mu1, var1, g1, b1, w1, bl1, mu2, var2, g2, b2, w2, bl2) = params
    s1 = g1 * jax.lax.rsqrt(var1 + EPS)                  # (1, F)
    w1f = w1 * jnp.transpose(s1)                         # (F, 512)
    bl1f = (b1 - mu1 * s1) @ w1 + bl1                    # (1, 512)
    s2 = g2 * jax.lax.rsqrt(var2 + EPS)                  # (1, 512)
    w2f = w2 * jnp.transpose(s2)                         # (512, 1)
    bl2f = (b2 - mu2 * s2) @ w2 + bl2                    # (1, 1)
    w2r = jnp.transpose(w2f)                             # (1, 512) row vector
    return w1f, bl1f, w2r, bl2f


def fcn_forward(x_nchw, params, *, tile_b=256, tile_k=512):
    # base is identity; Flatten (row-major, same as torch.nn.Flatten).
    N = x_nchw.shape[0]
    F = 1
    for d in x_nchw.shape[1:]:
        F *= int(d)
    x = x_nchw.reshape(N, F).astype(jnp.float32)

    # --- fold BN into the linears (trace time; constant-folded under jit) ----
    w1f, bl1f, w2r, bl2f = _fold_params(params)

    # --- batch tiling with zero padding (no divisibility assertion) ----------
    tb = min(tile_b, _round_up(N, 8))          # (8,128) sublane rule: tb % 8 == 0
    n_pad = _round_up(N, tb)
    if n_pad != N:
        x = jnp.pad(x, ((0, n_pad - N), (0, 0)))

    # --- K tiling over the flattened feature dim ------------------------------
    if tile_k % 128 == 0 and F % tile_k == 0:
        tk = tile_k
    else:
        tk = F                                  # full-F block (always legal)
        for cand in (1024, 512, 256, 128):
            if F % cand == 0:
                tk = cand
                break

    grid = (n_pad // tb, F // tk)

    # bf16 for the MXU operands; accumulation stays f32 inside the kernel.
    x_bf = x.astype(jnp.bfloat16)
    w1_bf = w1f.astype(jnp.bfloat16)

    out = pl.pallas_call(
        head_kernel,
        out_shape=jax.ShapeDtypeStruct((n_pad, OUT_F), jnp.float32),
        grid_spec=pltpu.PrefetchScalarGridSpec(
            num_scalar_prefetch=0,
            grid=grid,
            in_specs=[
                pl.BlockSpec((tb, tk), lambda i, k: (i, k)),        # x tile
                pl.BlockSpec((tk, HIDDEN), lambda i, k: (k, 0)),    # W1' (streamed)
                pl.BlockSpec((1, HIDDEN), lambda i, k: (0, 0)),     # b1'
                pl.BlockSpec((1, HIDDEN), lambda i, k: (0, 0)),     # W2' row
                pl.BlockSpec((1, OUT_F), lambda i, k: (0, 0)),      # b2'
            ],
            out_specs=pl.BlockSpec((tb, OUT_F), lambda i, k: (i, 0)),
            scratch_shapes=[pltpu.VMEM((tb, HIDDEN), jnp.float32)],
        ),
        compiler_params=pltpu.CompilerParams(
            dimension_semantics=("parallel", "arbitrary")),
    )(x_bf, w1_bf, bl1f, w2r, bl2f)

    return out[:N]


def init_params(key, in_f):
    ks = jax.random.split(key, 8)
    # BatchNorm1d(in_f): nontrivial deterministic "running" stats / affine.
    mu1 = (0.05 * jax.random.normal(ks[0], (1, in_f))).astype(jnp.float32)
    var1 = (1.0 + 0.1 * jax.random.uniform(ks[1], (1, in_f))).astype(jnp.float32)
    g1 = (1.0 + 0.02 * jax.random.normal(ks[2], (1, in_f))).astype(jnp.float32)
    b1 = (0.02 * jax.random.normal(ks[3], (1, in_f))).astype(jnp.float32)
    # Linear(in_f, 512): torch stores (512, in_f); we pass transposed (in_f, 512).
    w1 = (jax.random.normal(ks[4], (in_f, HIDDEN)) / jnp.sqrt(in_f)).astype(jnp.float32)
    bl1 = jnp.zeros((1, HIDDEN), jnp.float32)
    # BatchNorm1d(512)
    mu2 = (0.05 * jax.random.normal(ks[5], (1, HIDDEN))).astype(jnp.float32)
    var2 = (1.0 + 0.1 * jax.random.uniform(ks[6], (1, HIDDEN))).astype(jnp.float32)
    g2 = jnp.ones((1, HIDDEN), jnp.float32)
    b2 = jnp.zeros((1, HIDDEN), jnp.float32)
    # Linear(512, 1)
    w2 = (jax.random.normal(ks[7], (HIDDEN, OUT_F)) / jnp.sqrt(HIDDEN)).astype(jnp.float32)
    bl2 = jnp.full((1, OUT_F), 0.1, jnp.float32)
    return (mu1, var1, g1, b1, w1, bl1, mu2, var2, g2, b2, w2, bl2)


def reference_forward(x_nchw, params):
    """Pure f32, un-folded reference (exact PyTorch eval-mode semantics)."""
    (mu1, var1, g1, b1, w1, bl1, mu2, var2, g2, b2, w2, bl2) = params
    N = x_nchw.shape[0]
    x = x_nchw.reshape(N, -1).astype(jnp.float32)
    xn = (x - mu1) * jax.lax.rsqrt(var1 + EPS) * g1 + b1
    h = jnp.maximum(xn @ w1 + bl1, 0.0)
    hn = (h - mu2) * jax.lax.rsqrt(var2 + EPS) * g2 + b2
    return hn @ w2 + bl2


def reference_forward_matched(x_nchw, params):
    """Same folded / bf16-matmul math as the kernel, in plain jnp (tight check)."""
    w1f, bl1f, w2r, bl2f = _fold_params(params)
    N = x_nchw.shape[0]
    x = x_nchw.reshape(N, -1).astype(jnp.float32)
    h = jnp.dot(x.astype(jnp.bfloat16), w1f.astype(jnp.bfloat16),
                preferred_element_type=jnp.float32) + bl1f
    h = jnp.maximum(h, 0.0)
    return jnp.sum(h * w2r, axis=-1, keepdims=True) + bl2f


if __name__ == "__main__":
    key = jax.random.PRNGKey(0)
    k_x, k_p = jax.random.split(key)

    # Small NCHW input; base is identity so in_f = C*H*W = 4*16*16 = 1024.
    N, C, H, W = 2, 4, 16, 16
    x = jax.random.normal(k_x, (N, C, H, W), dtype=jnp.float32)
    params = init_params(k_p, C * H * W)

    fwd = jax.jit(fcn_forward)
    out = jax.block_until_ready(fwd(x, params))
    assert out.shape == (N, OUT_F)

    # Tight check vs. a jnp implementation of the same folded bf16 math.
    ref_matched = reference_forward_matched(x, params)
    assert jnp.allclose(out, ref_matched, atol=2e-3, rtol=2e-3), "kernel mismatch"

    # Loose check vs. exact f32 module semantics (bf16 matmul + fold rounding).
    ref_f32 = reference_forward(x, params)
    assert jnp.allclose(out, ref_f32, atol=6e-2, rtol=6e-2), "semantic mismatch"

    print("KERNEL_OK")
</pallas_src>

<mosaic_0001>
module attributes {stable_mosaic.version = 11 : i64} {
  func.func @head_kernel(%arg0: i32, %arg1: i32, %arg2: memref<8x512xbf16, #tpu.memory_space<vmem>>, %arg3: memref<512x512xbf16, #tpu.memory_space<vmem>>, %arg4: memref<1x512xf32, #tpu.memory_space<vmem>>, %arg5: memref<1x512xf32, #tpu.memory_space<vmem>>, %arg6: memref<1x1xf32, #tpu.memory_space<vmem>>, %arg7: memref<8x1xf32, #tpu.memory_space<vmem>>, %arg8: memref<8x512xf32, #tpu.memory_space<vmem>>) attributes {dimension_semantics = [#tpu.dimension_semantics<parallel>, #tpu.dimension_semantics<arbitrary>], iteration_bounds = array<i64: 1, 2>, scalar_prefetch = 0 : i64, scratch_operands = 1 : i64, tpu.core_type = #tpu.core_type<tc>, window_params = [{transform_indices = @transform_0, window_bounds = array<i64: 8, 512>}, {transform_indices = @transform_1, window_bounds = array<i64: 512, 512>}, {pipeline_mode = #tpu.pipeline_mode<synchronous>, transform_indices = @transform_2, window_bounds = array<i64: 1, 512>}, {pipeline_mode = #tpu.pipeline_mode<synchronous>, transform_indices = @transform_3, window_bounds = array<i64: 1, 512>}, {pipeline_mode = #tpu.pipeline_mode<synchronous>, transform_indices = @transform_4, window_bounds = array<i64: 1, 1>}, {transform_indices = @transform_5, window_bounds = array<i64: 8, 1>}]} {
    %c0_i32 = arith.constant 0 : i32
    %0 = arith.cmpi eq, %arg1, %c0_i32 : i32
    %1 = arith.extui %0 : i1 to i32
    %c0_i32_0 = arith.constant 0 : i32
    %2 = arith.cmpi ne, %1, %c0_i32_0 : i32
    scf.if %2 {
      %cst_9 = arith.constant 0.000000e+00 : f32
      %12 = vector.broadcast %cst_9 : f32 to vector<8x512xf32>
      %c0_10 = arith.constant 0 : index
      %c0_11 = arith.constant 0 : index
      %13 = vector.load %arg8[%c0_10, %c0_11] : memref<8x512xf32, #tpu.memory_space<vmem>>, vector<8x512xf32>
      tpu.vector_store %arg8[%c0_10, %c0_11], %12 {strides = array<i32>} : memref<8x512xf32, #tpu.memory_space<vmem>>, vector<8x512xf32>,
    } else {
    }
    %c0 = arith.constant 0 : index
    %c0_1 = arith.constant 0 : index
    %3 = vector.load %arg8[%c0, %c0_1] : memref<8x512xf32, #tpu.memory_space<vmem>>, vector<8x512xf32>
    %c0_2 = arith.constant 0 : index
    %c0_3 = arith.constant 0 : index
    %4 = vector.load %arg2[%c0_2, %c0_3] : memref<8x512xbf16, #tpu.memory_space<vmem>>, vector<8x512xbf16>
    %c0_4 = arith.constant 0 : index
    %c0_5 = arith.constant 0 : index
    %5 = vector.load %arg3[%c0_4, %c0_5] : memref<512x512xbf16, #tpu.memory_space<vmem>>, vector<512x512xbf16>
    %cst = arith.constant dense<0.000000e+00> : vector<8x512xf32>
    %6 = tpu.matmul %4, %5, %cst {dimension_numbers = #tpu.dot_dimension_numbers<[1], [0], [0], [1], [0, 0, 1, 1], [], []>} : vector<8x512xbf16>, vector<512x512xbf16>, vector<8x512xf32> -> vector<8x512xf32>
    %7 = arith.addf %3, %6 : vector<8x512xf32>
    %c0_6 = arith.constant 0 : index
    %c0_7 = arith.constant 0 : index
    %8 = vector.load %arg8[%c0_6, %c0_7] : memref<8x512xf32, #tpu.memory_space<vmem>>, vector<8x512xf32>
    tpu.vector_store %arg8[%c0_6, %c0_7], %7 {strides = array<i32>} : memref<8x512xf32, #tpu.memory_space<vmem>>, vector<8x512xf32>,
    %c1_i32 = arith.constant 1 : i32
    %9 = arith.cmpi eq, %arg1, %c1_i32 : i32
    %10 = arith.extui %9 : i1 to i32
    %c0_i32_8 = arith.constant 0 : i32
    %11 = arith.cmpi ne, %10, %c0_i32_8 : i32
    scf.if %11 {
      %c0_9 = arith.constant 0 : index
      %c0_10 = arith.constant 0 : index
      %12 = vector.load %arg8[%c0_9, %c0_10] : memref<8x512xf32, #tpu.memory_space<vmem>>, vector<8x512xf32>
      %c0_11 = arith.constant 0 : index
      %c0_12 = arith.constant 0 : index
      %13 = vector.load %arg4[%c0_11, %c0_12] : memref<1x512xf32, #tpu.memory_space<vmem>>, vector<1x512xf32>
      %14 = vector.broadcast %13 : vector<1x512xf32> to vector<8x512xf32>
      %15 = arith.addf %12, %14 : vector<8x512xf32>
      %cst_13 = arith.constant 0.000000e+00 : f32
      %16 = vector.broadcast %cst_13 : f32 to vector<8x512xf32>
      %17 = arith.maximumf %15, %16 : vector<8x512xf32>
      %c0_14 = arith.constant 0 : index
      %c0_15 = arith.constant 0 : index
      %18 = vector.load %arg5[%c0_14, %c0_15] : memref<1x512xf32, #tpu.memory_space<vmem>>, vector<1x512xf32>
      %19 = vector.broadcast %18 : vector<1x512xf32> to vector<8x512xf32>
      %20 = arith.mulf %17, %19 : vector<8x512xf32>
      %cst_16 = arith.constant dense<0.000000e+00> : vector<8xf32>
      %21 = vector.multi_reduction <add>, %20, %cst_16 [1] : vector<8x512xf32> to vector<8xf32>
      %22 = vector.shape_cast %21 : vector<8xf32> to vector<8x1xf32>
      %c0_17 = arith.constant 0 : index
      %c0_18 = arith.constant 0 : index
      %23 = vector.load %arg6[%c0_17, %c0_18] : memref<1x1xf32, #tpu.memory_space<vmem>>, vector<1x1xf32>
      %24 = vector.broadcast %23 : vector<1x1xf32> to vector<8x1xf32>
      %25 = arith.addf %22, %24 : vector<8x1xf32>
      %c0_19 = arith.constant 0 : index
      %c0_20 = arith.constant 0 : index
      %26 = vector.load %arg7[%c0_19, %c0_20] : memref<8x1xf32, #tpu.memory_space<vmem>>, vector<8x1xf32>
      tpu.vector_store %arg7[%c0_19, %c0_20], %25 {strides = array<i32>} : memref<8x1xf32, #tpu.memory_space<vmem>>, vector<8x1xf32>,
    } else {
    }
    return
  }
  func.func @transform_0(%arg0: i32, %arg1: i32) -> (i32, i32) {
    %c0_i32 = arith.constant 0 : i32
    return %arg0, %arg1 : i32, i32
  }
  func.func @transform_1(%arg0: i32, %arg1: i32) -> (i32, i32) {
    %c0_i32 = arith.constant 0 : i32
    %c0_i32_0 = arith.constant 0 : i32
    return %arg1, %c0_i32 : i32, i32
  }
  func.func @transform_2(%arg0: i32, %arg1: i32) -> (i32, i32) {
    %c0_i32 = arith.constant 0 : i32
    %c0_i32_0 = arith.constant 0 : i32
    %c0_i32_1 = arith.constant 0 : i32
    return %c0_i32, %c0_i32_0 : i32, i32
  }
  func.func @transform_3(%arg0: i32, %arg1: i32) -> (i32, i32) {
    %c0_i32 = arith.constant 0 : i32
    %c0_i32_0 = arith.constant 0 : i32
    %c0_i32_1 = arith.constant 0 : i32
    return %c0_i32, %c0_i32_0 : i32, i32
  }
  func.func @transform_4(%arg0: i32, %arg1: i32) -> (i32, i32) {
    %c0_i32 = arith.constant 0 : i32
    %c0_i32_0 = arith.constant 0 : i32
    %c0_i32_1 = arith.constant 0 : i32
    return %c0_i32, %c0_i32_0 : i32, i32
  }
  func.func @transform_5(%arg0: i32, %arg1: i32) -> (i32, i32) {
    %c0_i32 = arith.constant 0 : i32
    %c0_i32_0 = arith.constant 0 : i32
    return %arg0, %c0_i32 : i32, i32
  }
}

</mosaic_0001>

<llo_original>
// kernel: fcn_forward.1
$region0: #{fcn_forward.1}
  #allocation0 [shape = 'u32[]', space=smem, size = 0x4, offset = 0x4, fixed_abs, tag = 'smem constant byte address 0x4 - core index']
  #allocation1 [shape = 'u32[144,128]{1,0:T(1,128)}', space=vmem, size = 0x12000, scoped, tag = 'internal scratch']
  #allocation2 [shape = 'f32[8,512]{1,0:T(8,128)}', space=vmem, size = 0x4000, scoped, tag = 'scratch operand']
  #allocation3 [shape = 'f32[1,1]{1,0:T(1,128)S(1)}', space=vmem, size = 0x200, scoped, tag = 'scoped memory for fcn_forward.1']
  %s0 = inlined_call_operand.vmem [shape: bf16[8,1024], index: 0, kind: input, shape index: {}]
  %s1 = inlined_call_operand.vmem [shape: bf16[1024,512], index: 1, kind: input, shape index: {}]
  %s2 = inlined_call_operand.vmem [shape: f32[1,512], index: 2, kind: input, shape index: {}]
  %s3 = inlined_call_operand.vmem [shape: f32[1,512], index: 3, kind: input, shape index: {}]
  %s4 = inlined_call_operand.<no memory space> [shape: f32[1,1], index: 4, kind: input, shape index: {}]
  %s5 = inlined_call_operand.vmem [shape: f32[8,1], index: 5, kind: output, shape index: {}]
  %s6 = sld [smem:[#allocation0]]
  $region61: #{fcn_forward.1} parent=0
    _
  %s8 = ssub.s32 1, %s6
  %s9 = scalar_select 0, %s8, %s6
  %v10 = vstv %s4
  %11 = vst [vmem:[#allocation3] sm:$0x1] %v10
  loop: start=0, step=1, limit=4
  $region2: #{fcn_forward.1} parent=0 // loop_pre_header
    _
  $region3: #{fcn_forward.1} parent=0 // loop_header
    %s13 = sphi 0, %s17
    %p14 = scmp.ge.s32.totalorder %s13, 4
    %s20 = sphi 0, %s32
    %s21 = sphi 0, %s28
    %s22 = sphi 0, %s20
    %s23 = sphi 0, %s21
    %s24 = sphi 0, %s22
    %s25 = sphi 0, %s23
    %s37 = sphi 0, %s39
    %s40 = sphi 0, %s37
    %s41 = sphi 0, %s40
    %s57 = sphi 0, %s41
    %s63 = sphi 0, %s65
    %s66 = sphi 0, %s63
    %s67 = sphi 0, %s66
    %s83 = sphi 0, %s67
    %s87 = sphi 0, %s87
    %s89 = sphi 0, %s87
    %s90 = sphi 0, %s89
    %s104 = sphi 0, %s90
    %s108 = sphi 0, %s108
    %s110 = sphi 0, %s108
    %s111 = sphi 0, %s110
    %s125 = sphi 0, %s111
    %s129 = sphi 0, %s129
    %s131 = sphi 0, %s129
    %s132 = sphi 0, %s131
    %s146 = sphi 0, %s132
    %s152 = sphi 0, %s154
    %s155 = sphi 0, %s152
    %s156 = sphi 0, %s155
    %s172 = sphi 0, %s156
  $region4: #{fcn_forward.1} parent=0 // loop_header_branch
    %16 = sbr.rel (%p14) target = $region8
  $region5: #{fcn_forward.1} parent=0 // loop_body
    %s18 = ssub.s32 %s13, 1
    %s19 = ssub.s32 %s13, 2
    %s26 = sadd.s32 1, %s21
    %p27 = scmp.ge.s32.totalorder %s26, 2
    %s28 = scalar_select %p27, 0, %s26
    %s29 = sadd.s32 1, %s20
    %s30 = scalar_select %p27, %s29, %s20
    %p31 = scmp.ge.s32.totalorder %s30, 1
    %s32 = scalar_select %p31, 0, %s30
    %s33 = ssub.s32 %s20, %s32
    %s34 = ssub.s32 %s21, %s28
    %s35 = sor.u32 %s33, %s34
    %p36 = scmp.eq.s32.totalorder %s35, 0
    %s38 = sadd.s32 %s37, 1
    %s39 = scalar_select %p36, %s37, %s38
    %p42 = pneg %p36
    %p43 = scmp.eq.s32.totalorder %s13, 1
    %p44 = por %p42, %p43
    %p45 = scmp.ne.s32.totalorder %s37, %s40
    %p46 = scmp.eq.s32.totalorder %s13, 0
    %p47 = por %p45, %p46
    %p48 = scmp.ne.s32.totalorder %s37, %s40
    %p49 = scmp.eq.s32.totalorder %s18, 1
    %p50 = por %p48, %p49
    %p51 = scmp.ne.s32.totalorder %s40, %s41
    %p52 = scmp.eq.s32.totalorder %s18, 0
    %p53 = por %p51, %p52
    %p54 = scmp.ne.s32.totalorder %s40, %s41
    %p55 = scmp.eq.s32.totalorder %s19, 1
    %p56 = por %p54, %p55
    %p58 = scmp.ne.s32.totalorder %s41, %s57
    %p59 = scmp.eq.s32.totalorder %s19, 0
    %p60 = por %p58, %p59
    %s61 = ssub.s32 %s21, %s28
    %p62 = scmp.eq.s32.totalorder %s61, 0
    %s64 = sadd.s32 %s63, 1
    %s65 = scalar_select %p62, %s63, %s64
    %p68 = pneg %p62
    %p69 = scmp.eq.s32.totalorder %s13, 1
    %p70 = por %p68, %p69
    %p71 = scmp.ne.s32.totalorder %s63, %s66
    %p72 = scmp.eq.s32.totalorder %s13, 0
    %p73 = por %p71, %p72
    %p74 = scmp.ne.s32.totalorder %s63, %s66
    %p75 = scmp.eq.s32.totalorder %s18, 1
    %p76 = por %p74, %p75
    %p77 = scmp.ne.s32.totalorder %s66, %s67
    %p78 = scmp.eq.s32.totalorder %s18, 0
    %p79 = por %p77, %p78
    %p80 = scmp.ne.s32.totalorder %s66, %s67
    %p81 = scmp.eq.s32.totalorder %s19, 1
    %p82 = por %p80, %p81
    %p84 = scmp.ne.s32.totalorder %s67, %s83
    %p85 = scmp.eq.s32.totalorder %s19, 0
    %p86 = por %p84, %p85
    %s88 = sadd.s32 %s87, 1
    %p91 = scmp.eq.s32.totalorder %s13, 1
    %p92 = scmp.ne.s32.totalorder %s87, %s89
    %p93 = scmp.eq.s32.totalorder %s13, 0
    %p94 = por %p92, %p93
    %p95 = scmp.ne.s32.totalorder %s87, %s89
    %p96 = scmp.eq.s32.totalorder %s18, 1
    %p97 = por %p95, %p96
    %p98 = scmp.ne.s32.totalorder %s89, %s90
    %p99 = scmp.eq.s32.totalorder %s18, 0
    %p100 = por %p98, %p99
    %p101 = scmp.ne.s32.totalorder %s89, %s90
    %p102 = scmp.eq.s32.totalorder %s19, 1
    %p103 = por %p101, %p102
    %p105 = scmp.ne.s32.totalorder %s90, %s104
    %p106 = scmp.eq.s32.totalorder %s19, 0
    %p107 = por %p105, %p106
    %s109 = sadd.s32 %s108, 1
    %p112 = scmp.eq.s32.totalorder %s13, 1
    %p113 = scmp.ne.s32.totalorder %s108, %s110
    %p114 = scmp.eq.s32.totalorder %s13, 0
    %p115 = por %p113, %p114
    %p116 = scmp.ne.s32.totalorder %s108, %s110
    %p117 = scmp.eq.s32.totalorder %s18, 1
    %p118 = por %p116, %p117
    %p119 = scmp.ne.s32.totalorder %s110, %s111
    %p120 = scmp.eq.s32.totalorder %s18, 0
    %p121 = por %p119, %p120
    %p122 = scmp.ne.s32.totalorder %s110, %s111
    %p123 = scmp.eq.s32.totalorder %s19, 1
    %p124 = por %p122, %p123
    %p126 = scmp.ne.s32.totalorder %s111, %s125
    %p127 = scmp.eq.s32.totalorder %s19, 0
    %p128 = por %p126, %p127
    %s130 = sadd.s32 %s129, 1
    %p133 = scmp.eq.s32.totalorder %s13, 1
    %p134 = scmp.ne.s32.totalorder %s129, %s131
    %p135 = scmp.eq.s32.totalorder %s13, 0
    %p136 = por %p134, %p135
    %p137 = scmp.ne.s32.totalorder %s129, %s131
    %p138 = scmp.eq.s32.totalorder %s18, 1
    %p139 = por %p137, %p138
    %p140 = scmp.ne.s32.totalorder %s131, %s132
    %p141 = scmp.eq.s32.totalorder %s18, 0
    %p142 = por %p140, %p141
    %p143 = scmp.ne.s32.totalorder %s131, %s132
    %p144 = scmp.eq.s32.totalorder %s19, 1
    %p145 = por %p143, %p144
    %p147 = scmp.ne.s32.totalorder %s132, %s146
    %p148 = scmp.eq.s32.totalorder %s19, 0
    %p149 = por %p147, %p148
    %s150 = ssub.s32 %s20, %s32
    %p151 = scmp.eq.s32.totalorder %s150, 0
    %s153 = sadd.s32 %s152, 1
    %s154 = scalar_select %p151, %s152, %s153
    %p157 = pneg %p151
    %p158 = scmp.eq.s32.totalorder %s13, 1
    %p159 = por %p157, %p158
    %p160 = scmp.ne.s32.totalorder %s152, %s155
    %p161 = scmp.eq.s32.totalorder %s13, 0
    %p162 = por %p160, %p161
    %p163 = scmp.ne.s32.totalorder %s152, %s155
    %p164 = scmp.eq.s32.totalorder %s18, 1
    %p165 = por %p163, %p164
    %p166 = scmp.ne.s32.totalorder %s155, %s156
    %p167 = scmp.eq.s32.totalorder %s18, 0
    %p168 = por %p166, %p167
    %p169 = scmp.ne.s32.totalorder %s155, %s156
    %p170 = scmp.eq.s32.totalorder %s19, 1
    %p171 = por %p169, %p170
    %p173 = scmp.ne.s32.totalorder %s156, %s172
    %p174 = scmp.eq.s32.totalorder %s19, 0
    %p175 = por %p173, %p174
    %p176 = scmp.le.s32.totalorder 1, %s13
    %p177 = scmp.lt.s32.totalorder %s13, 3
    %p178 = pnand %p176, %p177
    %p179 = pneg %p178
    // Predicated region
    $region9: #{fcn_forward.1} parent=5 // pred_check
      _
    $region10: #{fcn_forward.1} parent=5 // pred_check_branch
      %181 = sbr.rel (%p178) target = $region12
    $region11: #{fcn_forward.1} parent=5 // pred_region
      %s182 = ssub.s32 %s13, 1
      // Predicated region
      $region13: #{fcn_forward.1} parent=11 // pred_check
        %p183 = pneg %p100
      $region14: #{fcn_forward.1} parent=11 // pred_check_branch
        %185 = sbr.rel (%p183) target = $region16
      $region15: #{fcn_forward.1} parent=11 // pred_region
        _
      $region16: #{fcn_forward.1} parent=11 // pred_fallthru
        _
      // Predicated region
      $region17: #{fcn_forward.1} parent=11 // pred_check
        %p186 = pneg %p121
      $region18: #{fcn_forward.1} parent=11 // pred_check_branch
        %188 = sbr.rel (%p186) target = $region20
      $region19: #{fcn_forward.1} parent=11 // pred_region
        _
      $region20: #{fcn_forward.1} parent=11 // pred_fallthru
        _
      // Predicated region
      $region21: #{fcn_forward.1} parent=11 // pred_check
        %p189 = pneg %p142
      $region22: #{fcn_forward.1} parent=11 // pred_check_branch
        %191 = sbr.rel (%p189) target = $region24
      $region23: #{fcn_forward.1} parent=11 // pred_region
        _
      $region24: #{fcn_forward.1} parent=11 // pred_fallthru
        _
    $region12: #{fcn_forward.1} parent=5 // pred_fallthru
      _
    %p192 = scmp.lt.s32.totalorder %s13, 2
    // Predicated region
    $region25: #{fcn_forward.1} parent=5 // pred_check
      %p193 = pneg %p192
    $region26: #{fcn_forward.1} parent=5 // pred_check_branch
      %195 = sbr.rel (%p193) target = $region28
    $region27: #{fcn_forward.1} parent=5 // pred_region
      // Predicated region
      $region29: #{fcn_forward.1} parent=27 // pred_check
        %p196 = pneg %p47
      $region30: #{fcn_forward.1} parent=27 // pred_check_branch
        %198 = sbr.rel (%p196) target = $region32
      $region31: #{fcn_forward.1} parent=27 // pred_region
        %s199 = smul.u32 4, %s21
        %p200 = scmp.lt.s32.totalorder %s20, 0
        %s201 = scalar_select %p200, %s20, 0
        %p202 = scmp.lt.s32.totalorder %s199, 7
        %s203 = scalar_select %p202, %s199, 7
        %s204 = smul.addr %s201, 8
        %s205 = sadd.s32 %s203, %s204
        %s206 = smul.addr %s205, 4
        %s207 = scalar_lea.vmem %s0, %s206
        %s208 = smul.u32 4, %s21
      $region32: #{fcn_forward.1} parent=27 // pred_fallthru
        _
      // Predicated region
      $region33: #{fcn_forward.1} parent=27 // pred_check
        %p209 = pneg %p73
      $region34: #{fcn_forward.1} parent=27 // pred_check_branch
        %211 = sbr.rel (%p209) target = $region36
      $region35: #{fcn_forward.1} parent=27 // pred_region
        %s212 = smul.u32 64, %s21
        %p213 = scmp.lt.s32.totalorder %s212, 127
        %s214 = scalar_select %p213, %s212, 127
        %s215 = smul.addr %s214, 4
        %s216 = smul.addr %s215, 4
        %s217 = scalar_lea.vmem %s1, %s216
        %s218 = smul.u32 64, %s21
      $region36: #{fcn_forward.1} parent=27 // pred_fallthru
        _
    $region28: #{fcn_forward.1} parent=5 // pred_fallthru
      _
    %p219 = scmp.le.s32.totalorder 1, %s13
    %p220 = scmp.lt.s32.totalorder %s13, 3
    %p221 = pnand %p219, %p220
    %p222 = pneg %p221
    // Predicated region
    $region37: #{fcn_forward.1} parent=5 // pred_check
      _
    $region38: #{fcn_forward.1} parent=5 // pred_check_branch
      %224 = sbr.rel (%p221) target = $region40
    $region39: #{fcn_forward.1} parent=5 // pred_region
      %s225 = ssub.s32 %s13, 1
      %s226 = smul.u32 4, %s23
      %p227 = scmp.lt.s32.totalorder %s22, 0
      %s228 = scalar_select %p227, %s22, 0
      %p229 = scmp.lt.s32.totalorder %s226, 7
      %s230 = scalar_select %p229, %s226, 7
      %s231 = smul.addr %s228, 8
      %s232 = sadd.s32 %s230, %s231
      %s233 = smul.addr %s232, 4
      %s234 = scalar_lea.vmem %s0, %s233
      %p235 = pneg %p53
      %p236 = pneg %p50
      %s237 = smul.u32 64, %s23
      %p238 = scmp.lt.s32.totalorder %s237, 127
      %s239 = scalar_select %p238, %s237, 127
      %s240 = smul.addr %s239, 4
      %s241 = smul.addr %s240, 4
      %s242 = scalar_lea.vmem %s1, %s241
      %p243 = pneg %p79
      %p244 = pneg %p76
      %p245 = pneg %p100
      %p246 = pneg %p97
      %p247 = pneg %p121
      %p248 = pneg %p118
      %p249 = pneg %p142
      %p250 = pneg %p139
      %p251 = pneg %p168
      %p252 = pneg %p165
      %p253 = scmp.lt.s32.totalorder %s22, 0
      %s254 = scalar_select %p253, %s22, 0
      %s255 = smul.addr %s254, 8
      %s256 = scalar_lea.vmem %s5, %s255
      %s257 = smul.u32 4, %s23
      %p258 = scmp.lt.s32.totalorder %s22, 0
      %s259 = scalar_select %p258, %s22, 0
      %p260 = scmp.lt.s32.totalorder %s257, 7
      %s261 = scalar_select %p260, %s257, 7
      %s262 = smul.addr %s259, 8
      %s263 = sadd.s32 %s261, %s262
      %s264 = smul.addr %s263, 4
      %s265 = scalar_lea.vmem %s0, %s264
      %s266 = smul.u32 4, %s23
      %s267 = smul.u32 64, %s23
      %p268 = scmp.lt.s32.totalorder %s267, 127
      %s269 = scalar_select %p268, %s267, 127
      %s270 = smul.addr %s269, 4
      %s271 = smul.addr %s270, 4
      %s272 = scalar_lea.vmem %s1, %s271
      %s273 = smul.u32 64, %s23
      %p274 = scmp.lt.s32.totalorder %s22, 0
      %s275 = scalar_select %p274, %s22, 0
      %s276 = smul.addr %s275, 8
      %s277 = scalar_lea.vmem %s5, %s276
      %p278 = scmp.eq.s32.totalorder %s23, 0
      // Predicated region
      $region41: #{fcn_forward.1} parent=39 // pred_check
        %p279 = pneg %p278
      $region42: #{fcn_forward.1} parent=39 // pred_check_branch
        %281 = sbr.rel (%p279) target = $region44
      $region43: #{fcn_forward.1} parent=39 // pred_region
        %282 = vst [vmem:[#allocation2] sm:$0xff] 0.0
        %283 = vst [vmem:[#allocation2 + $0x8] sm:$0xff] 0.0
        %284 = vst [vmem:[#allocation2 + $0x10] sm:$0xff] 0.0
        %285 = vst [vmem:[#allocation2 + $0x18] sm:$0xff] 0.0
      $region44: #{fcn_forward.1} parent=39 // pred_fallthru
        _
      %v286 = vld [vmem:[#allocation2] sm:$0xff]
      %v287 = vld [vmem:[#allocation2 + $0x8] sm:$0xff]
      %v288 = vld [vmem:[#allocation2 + $0x10] sm:$0xff]
      %v289 = vld [vmem:[#allocation2 + $0x18] sm:$0xff]
      %v290 = vld [vmem:[%s265] sm:$0xff]
      %v291 = vld [vmem:[%s265 + $0x8] sm:$0xff]
      %v292 = vld [vmem:[%s272] sm:$0xff]
      %v293 = vld [vmem:[%s272 + $0x8] sm:$0xff]
      %v294 = vld [vmem:[%s272 + $0x10] sm:$0xff]
      %v295 = vld [vmem:[%s272 + $0x18] sm:$0xff]
      %v296 = vld [vmem:[%s272 + $0x20] sm:$0xff]
      %v297 = vld [vmem:[%s272 + $0x28] sm:$0xff]
      %v298 = vld [vmem:[%s272 + $0x30] sm:$0xff]
      %v299 = vld [vmem:[%s272 + $0x38] sm:$0xff]
      %v300 = vld [vmem:[%s272 + $0x40] sm:$0xff]
      %v301 = vld [vmem:[%s272 + $0x48] sm:$0xff]
      %v302 = vld [vmem:[%s272 + $0x50] sm:$0xff]
      %v303 = vld [vmem:[%s272 + $0x58] sm:$0xff]
      %v304 = vld [vmem:[%s272 + $0x60] sm:$0xff]
      %v305 = vld [vmem:[%s272 + $0x68] sm:$0xff]
      %v306 = vld [vmem:[%s272 + $0x70] sm:$0xff]
      %v307 = vld [vmem:[%s272 + $0x78] sm:$0xff]
      %v308 = vld [vmem:[%s272 + $0x80] sm:$0xff]
      %v309 = vld [vmem:[%s272 + $0x88] sm:$0xff]
      %v310 = vld [vmem:[%s272 + $0x90] sm:$0xff]
      %v311 = vld [vmem:[%s272 + $0x98] sm:$0xff]
      %v312 = vld [vmem:[%s272 + $0xa0] sm:$0xff]
      %v313 = vld [vmem:[%s272 + $0xa8] sm:$0xff]
      %v314 = vld [vmem:[%s272 + $0xb0] sm:$0xff]
      %v315 = vld [vmem:[%s272 + $0xb8] sm:$0xff]
      %v316 = vld [vmem:[%s272 + $0xc0] sm:$0xff]
      %v317 = vld [vmem:[%s272 + $0xc8] sm:$0xff]
      %v318 = vld [vmem:[%s272 + $0xd0] sm:$0xff]
      %v319 = vld [vmem:[%s272 + $0xd8] sm:$0xff]
      %v320 = vld [vmem:[%s272 + $0xe0] sm:$0xff]
      %v321 = vld [vmem:[%s272 + $0xe8] sm:$0xff]
      %v322 = vld [vmem:[%s272 + $0xf0] sm:$0xff]
      %v323 = vld [vmem:[%s272 + $0xf8] sm:$0xff]
      %v324 = vld [vmem:[%s272 + $0x100] sm:$0xff]
      %v325 = vld [vmem:[%s272 + $0x108] sm:$0xff]
      %v326 = vld [vmem:[%s272 + $0x110] sm:$0xff]
      %v327 = vld [vmem:[%s272 + $0x118] sm:$0xff]
      %v328 = vld [vmem:[%s272 + $0x120] sm:$0xff]
      %v329 = vld [vmem:[%s272 + $0x128] sm:$0xff]
      %v330 = vld [vmem:[%s272 + $0x130] sm:$0xff]
      %v331 = vld [vmem:[%s272 + $0x138] sm:$0xff]
      %v332 = vld [vmem:[%s272 + $0x140] sm:$0xff]
      %v333 = vld [vmem:[%s272 + $0x148] sm:$0xff]
      %v334 = vld [vmem:[%s272 + $0x150] sm:$0xff]
      %v335 = vld [vmem:[%s272 + $0x158] sm:$0xff]
      %v336 = vld [vmem:[%s272 + $0x160] sm:$0xff]
      %v337 = vld [vmem:[%s272 + $0x168] sm:$0xff]
      %v338 = vld [vmem:[%s272 + $0x170] sm:$0xff]
      %v339 = vld [vmem:[%s272 + $0x178] sm:$0xff]
      %v340 = vld [vmem:[%s272 + $0x180] sm:$0xff]
      %v341 = vld [vmem:[%s272 + $0x188] sm:$0xff]
      %v342 = vld [vmem:[%s272 + $0x190] sm:$0xff]
      %v343 = vld [vmem:[%s272 + $0x198] sm:$0xff]
      %v344 = vld [vmem:[%s272 + $0x1a0] sm:$0xff]
      %v345 = vld [vmem:[%s272 + $0x1a8] sm:$0xff]
      %v346 = vld [vmem:[%s272 + $0x1b0] sm:$0xff]
      %v347 = vld [vmem:[%s272 + $0x1b8] sm:$0xff]
      %v348 = vld [vmem:[%s272 + $0x1c0] sm:$0xff]
      %v349 = vld [vmem:[%s272 + $0x1c8] sm:$0xff]
      %v350 = vld [vmem:[%s272 + $0x1d0] sm:$0xff]
      %v351 = vld [vmem:[%s272 + $0x1d8] sm:$0xff]
      %v352 = vld [vmem:[%s272 + $0x1e0] sm:$0xff]
      %v353 = vld [vmem:[%s272 + $0x1e8] sm:$0xff]
      %v354 = vld [vmem:[%s272 + $0x1f0] sm:$0xff]
      %v355 = vld [vmem:[%s272 + $0x1f8] sm:$0xff]
      %v356 = vld [vmem:[%s272 + $0x200] sm:$0xff]
      %v357 = vld [vmem:[%s272 + $0x208] sm:$0xff]
      %v358 = vld [vmem:[%s272 + $0x210] sm:$0xff]
      %v359 = vld [vmem:[%s272 + $0x218] sm:$0xff]
      %v360 = vld [vmem:[%s272 + $0x220] sm:$0xff]
      %v361 = vld [vmem:[%s272 + $0x228] sm:$0xff]
      %v362 = vld [vmem:[%s272 + $0x230] sm:$0xff]
      %v363 = vld [vmem:[%s272 + $0x238] sm:$0xff]
      %v364 = vld [vmem:[%s272 + $0x240] sm:$0xff]
      %v365 = vld [vmem:[%s272 + $0x248] sm:$0xff]
      %v366 = vld [vmem:[%s272 + $0x250] sm:$0xff]
      %v367 = vld [vmem:[%s272 + $0x258] sm:$0xff]
      %v368 = vld [vmem:[%s272 + $0x260] sm:$0xff]
      %v369 = vld [vmem:[%s272 + $0x268] sm:$0xff]
      %v370 = vld [vmem:[%s272 + $0x270] sm:$0xff]
      %v371 = vld [vmem:[%s272 + $0x278] sm:$0xff]
      %v372 = vld [vmem:[%s272 + $0x280] sm:$0xff]
      %v373 = vld [vmem:[%s272 + $0x288] sm:$0xff]
      %v374 = vld [vmem:[%s272 + $0x290] sm:$0xff]
      %v375 = vld [vmem:[%s272 + $0x298] sm:$0xff]
      %v376 = vld [vmem:[%s272 + $0x2a0] sm:$0xff]
      %v377 = vld [vmem:[%s272 + $0x2a8] sm:$0xff]
      %v378 = vld [vmem:[%s272 + $0x2b0] sm:$0xff]
      %v379 = vld [vmem:[%s272 + $0x2b8] sm:$0xff]
      %v380 = vld [vmem:[%s272 + $0x2c0] sm:$0xff]
      %v381 = vld [vmem:[%s272 + $0x2c8] sm:$0xff]
      %v382 = vld [vmem:[%s272 + $0x2d0] sm:$0xff]
      %v383 = vld [vmem:[%s272 + $0x2d8] sm:$0xff]
      %v384 = vld [vmem:[%s272 + $0x2e0] sm:$0xff]
      %v385 = vld [vmem:[%s272 + $0x2e8] sm:$0xff]
      %v386 = vld [vmem:[%s272 + $0x2f0] sm:$0xff]
      %v387 = vld [vmem:[%s272 + $0x2f8] sm:$0xff]
      %v388 = vld [vmem:[%s272 + $0x300] sm:$0xff]
      %v389 = vld [vmem:[%s272 + $0x308] sm:$0xff]
      %v390 = vld [vmem:[%s272 + $0x310] sm:$0xff]
      %v391 = vld [vmem:[%s272 + $0x318] sm:$0xff]
      %v392 = vld [vmem:[%s272 + $0x320] sm:$0xff]
      %v393 = vld [vmem:[%s272 + $0x328] sm:$0xff]
      %v394 = vld [vmem:[%s272 + $0x330] sm:$0xff]
      %v395 = vld [vmem:[%s272 + $0x338] sm:$0xff]
      %v396 = vld [vmem:[%s272 + $0x340] sm:$0xff]
      %v397 = vld [vmem:[%s272 + $0x348] sm:$0xff]
      %v398 = vld [vmem:[%s272 + $0x350] sm:$0xff]
      %v399 = vld [vmem:[%s272 + $0x358] sm:$0xff]
      %v400 = vld [vmem:[%s272 + $0x360] sm:$0xff]
      %v401 = vld [vmem:[%s272 + $0x368] sm:$0xff]
      %v402 = vld [vmem:[%s272 + $0x370] sm:$0xff]
      %v403 = vld [vmem:[%s272 + $0x378] sm:$0xff]
      %v404 = vld [vmem:[%s272 + $0x380] sm:$0xff]
      %v405 = vld [vmem:[%s272 + $0x388] sm:$0xff]
      %v406 = vld [vmem:[%s272 + $0x390] sm:$0xff]
      %v407 = vld [vmem:[%s272 + $0x398] sm:$0xff]
      %v408 = vld [vmem:[%s272 + $0x3a0] sm:$0xff]
      %v409 = vld [vmem:[%s272 + $0x3a8] sm:$0xff]
      %v410 = vld [vmem:[%s272 + $0x3b0] sm:$0xff]
      %v411 = vld [vmem:[%s272 + $0x3b8] sm:$0xff]
      %v412 = vld [vmem:[%s272 + $0x3c0] sm:$0xff]
      %v413 = vld [vmem:[%s272 + $0x3c8] sm:$0xff]
      %v414 = vld [vmem:[%s272 + $0x3d0] sm:$0xff]
      %v415 = vld [vmem:[%s272 + $0x3d8] sm:$0xff]
      %v416 = vld [vmem:[%s272 + $0x3e0] sm:$0xff]
      %v417 = vld [vmem:[%s272 + $0x3e8] sm:$0xff]
      %v418 = vld [vmem:[%s272 + $0x3f0] sm:$0xff]
      %v419 = vld [vmem:[%s272 + $0x3f8] sm:$0xff]
      %v422 = vunpack.c.l.b16 %v290
      %v423 = vunpack.c.h.b16 %v290
      %v424 = vunpack.c.l.b16 %v291
      %v425 = vunpack.c.h.b16 %v291
      %v426 = vpack.c.b16 %v422, %v422
      %v427 = vpack.c.b16 %v423, %v423
      %v428 = vpack.c.b16 %v424, %v424
      %v429 = vpack.c.b16 %v425, %v425
      %v562 = vunpack.c.l.b16 %v292
      %v563 = vunpack.c.h.b16 %v292
      %v564 = vunpack.c.l.b16 %v293
      %v565 = vunpack.c.h.b16 %v293
      %v566 = vunpack.c.l.b16 %v294
      %v567 = vunpack.c.h.b16 %v294
      %v568 = vunpack.c.l.b16 %v295
      %v569 = vunpack.c.h.b16 %v295
      %v570 = vunpack.c.l.b16 %v296
      %v571 = vunpack.c.h.b16 %v296
      %v572 = vunpack.c.l.b16 %v297
      %v573 = vunpack.c.h.b16 %v297
      %v574 = vunpack.c.l.b16 %v298
      %v575 = vunpack.c.h.b16 %v298
      %v576 = vunpack.c.l.b16 %v299
      %v577 = vunpack.c.h.b16 %v299
      %v578 = vunpack.c.l.b16 %v300
      %v579 = vunpack.c.h.b16 %v300
      %v580 = vunpack.c.l.b16 %v301
      %v581 = vunpack.c.h.b16 %v301
      %v582 = vunpack.c.l.b16 %v302
      %v583 = vunpack.c.h.b16 %v302
      %v584 = vunpack.c.l.b16 %v303
      %v585 = vunpack.c.h.b16 %v303
      %v586 = vunpack.c.l.b16 %v304
      %v587 = vunpack.c.h.b16 %v304
      %v588 = vunpack.c.l.b16 %v305
      %v589 = vunpack.c.h.b16 %v305
      %v590 = vunpack.c.l.b16 %v306
      %v591 = vunpack.c.h.b16 %v306
      %v592 = vunpack.c.l.b16 %v307
      %v593 = vunpack.c.h.b16 %v307
      %v594 = vunpack.c.l.b16 %v308
      %v595 = vunpack.c.h.b16 %v308
      %v596 = vunpack.c.l.b16 %v309
      %v597 = vunpack.c.h.b16 %v309
      %v598 = vunpack.c.l.b16 %v310
      %v599 = vunpack.c.h.b16 %v310
      %v600 = vunpack.c.l.b16 %v311
      %v601 = vunpack.c.h.b16 %v311
      %v602 = vunpack.c.l.b16 %v312
      %v603 = vunpack.c.h.b16 %v312
      %v604 = vunpack.c.l.b16 %v313
      %v605 = vunpack.c.h.b16 %v313
      %v606 = vunpack.c.l.b16 %v314
      %v607 = vunpack.c.h.b16 %v314
      %v608 = vunpack.c.l.b16 %v315
      %v609 = vunpack.c.h.b16 %v315
      %v610 = vunpack.c.l.b16 %v316
      %v611 = vunpack.c.h.b16 %v316
      %v612 = vunpack.c.l.b16 %v317
      %v613 = vunpack.c.h.b16 %v317
      %v614 = vunpack.c.l.b16 %v318
      %v615 = vunpack.c.h.b16 %v318
      %v616 = vunpack.c.l.b16 %v319
      %v617 = vunpack.c.h.b16 %v319
      %v618 = vunpack.c.l.b16 %v320
      %v619 = vunpack.c.h.b16 %v320
      %v620 = vunpack.c.l.b16 %v321
      %v621 = vunpack.c.h.b16 %v321
      %v622 = vunpack.c.l.b16 %v322
      %v623 = vunpack.c.h.b16 %v322
      %v624 = vunpack.c.l.b16 %v323
      %v625 = vunpack.c.h.b16 %v323
      %v626 = vunpack.c.l.b16 %v324
      %v627 = vunpack.c.h.b16 %v324
      %v628 = vunpack.c.l.b16 %v325
      %v629 = vunpack.c.h.b16 %v325
      %v630 = vunpack.c.l.b16 %v326
      %v631 = vunpack.c.h.b16 %v326
      %v632 = vunpack.c.l.b16 %v327
      %v633 = vunpack.c.h.b16 %v327
      %v634 = vunpack.c.l.b16 %v328
      %v635 = vunpack.c.h.b16 %v328
      %v636 = vunpack.c.l.b16 %v329
      %v637 = vunpack.c.h.b16 %v329
      %v638 = vunpack.c.l.b16 %v330
      %v639 = vunpack.c.h.b16 %v330
      %v640 = vunpack.c.l.b16 %v331
      %v641 = vunpack.c.h.b16 %v331
      %v642 = vunpack.c.l.b16 %v332
      %v643 = vunpack.c.h.b16 %v332
      %v644 = vunpack.c.l.b16 %v333
      %v645 = vunpack.c.h.b16 %v333
      %v646 = vunpack.c.l.b16 %v334
      %v647 = vunpack.c.h.b16 %v334
      %v648 = vunpack.c.l.b16 %v335
      %v649 = vunpack.c.h.b16 %v335
      %v650 = vunpack.c.l.b16 %v336
      %v651 = vunpack.c.h.b16 %v336
      %v652 = vunpack.c.l.b16 %v337
      %v653 = vunpack.c.h.b16 %v337
      %v654 = vunpack.c.l.b16 %v338
      %v655 = vunpack.c.h.b16 %v338
      %v656 = vunpack.c.l.b16 %v339
      %v657 = vunpack.c.h.b16 %v339
      %v658 = vunpack.c.l.b16 %v340
      %v659 = vunpack.c.h.b16 %v340
      %v660 = vunpack.c.l.b16 %v341
      %v661 = vunpack.c.h.b16 %v341
      %v662 = vunpack.c.l.b16 %v342
      %v663 = vunpack.c.h.b16 %v342
      %v664 = vunpack.c.l.b16 %v343
      %v665 = vunpack.c.h.b16 %v343
      %v666 = vunpack.c.l.b16 %v344
      %v667 = vunpack.c.h.b16 %v344
      %v668 = vunpack.c.l.b16 %v345
      %v669 = vunpack.c.h.b16 %v345
      %v670 = vunpack.c.l.b16 %v346
      %v671 = vunpack.c.h.b16 %v346
      %v672 = vunpack.c.l.b16 %v347
      %v673 = vunpack.c.h.b16 %v347
      %v674 = vunpack.c.l.b16 %v348
      %v675 = vunpack.c.h.b16 %v348
      %v676 = vunpack.c.l.b16 %v349
      %v677 = vunpack.c.h.b16 %v349
      %v678 = vunpack.c.l.b16 %v350
      %v679 = vunpack.c.h.b16 %v350
      %v680 = vunpack.c.l.b16 %v351
      %v681 = vunpack.c.h.b16 %v351
      %v682 = vunpack.c.l.b16 %v352
      %v683 = vunpack.c.h.b16 %v352
      %v684 = vunpack.c.l.b16 %v353
      %v685 = vunpack.c.h.b16 %v353
      %v686 = vunpack.c.l.b16 %v354
      %v687 = vunpack.c.h.b16 %v354
      %v688 = vunpack.c.l.b16 %v355
      %v689 = vunpack.c.h.b16 %v355
      %v690 = vunpack.c.l.b16 %v356
      %v691 = vunpack.c.h.b16 %v356
      %v692 = vunpack.c.l.b16 %v357
      %v693 = vunpack.c.h.b16 %v357
      %v694 = vunpack.c.l.b16 %v358
      %v695 = vunpack.c.h.b16 %v358
      %v696 = vunpack.c.l.b16 %v359
      %v697 = vunpack.c.h.b16 %v359
      %v698 = vunpack.c.l.b16 %v360
      %v699 = vunpack.c.h.b16 %v360
      %v700 = vunpack.c.l.b16 %v361
      %v701 = vunpack.c.h.b16 %v361
      %v702 = vunpack.c.l.b16 %v362
      %v703 = vunpack.c.h.b16 %v362
      %v704 = vunpack.c.l.b16 %v363
      %v705 = vunpack.c.h.b16 %v363
      %v706 = vunpack.c.l.b16 %v364
      %v707 = vunpack.c.h.b16 %v364
      %v708 = vunpack.c.l.b16 %v365
      %v709 = vunpack.c.h.b16 %v365
      %v710 = vunpack.c.l.b16 %v366
      %v711 = vunpack.c.h.b16 %v366
      %v712 = vunpack.c.l.b16 %v367
      %v713 = vunpack.c.h.b16 %v367
      %v714 = vunpack.c.l.b16 %v368
      %v715 = vunpack.c.h.b16 %v368
      %v716 = vunpack.c.l.b16 %v369
      %v717 = vunpack.c.h.b16 %v369
      %v718 = vunpack.c.l.b16 %v370
      %v719 = vunpack.c.h.b16 %v370
      %v720 = vunpack.c.l.b16 %v371
      %v721 = vunpack.c.h.b16 %v371
      %v722 = vunpack.c.l.b16 %v372
      %v723 = vunpack.c.h.b16 %v372
      %v724 = vunpack.c.l.b16 %v373
      %v725 = vunpack.c.h.b16 %v373
      %v726 = vunpack.c.l.b16 %v374
      %v727 = vunpack.c.h.b16 %v374
      %v728 = vunpack.c.l.b16 %v375
      %v729 = vunpack.c.h.b16 %v375
      %v730 = vunpack.c.l.b16 %v376
      %v731 = vunpack.c.h.b16 %v376
      %v732 = vunpack.c.l.b16 %v377
      %v733 = vunpack.c.h.b16 %v377
      %v734 = vunpack.c.l.b16 %v378
      %v735 = vunpack.c.h.b16 %v378
      %v736 = vunpack.c.l.b16 %v379
      %v737 = vunpack.c.h.b16 %v379
      %v738 = vunpack.c.l.b16 %v380
      %v739 = vunpack.c.h.b16 %v380
      %v740 = vunpack.c.l.b16 %v381
      %v741 = vunpack.c.h.b16 %v381
      %v742 = vunpack.c.l.b16 %v382
      %v743 = vunpack.c.h.b16 %v382
      %v744 = vunpack.c.l.b16 %v383
      %v745 = vunpack.c.h.b16 %v383
      %v746 = vunpack.c.l.b16 %v384
      %v747 = vunpack.c.h.b16 %v384
      %v748 = vunpack.c.l.b16 %v385
      %v749 = vunpack.c.h.b16 %v385
      %v750 = vunpack.c.l.b16 %v386
      %v751 = vunpack.c.h.b16 %v386
      %v752 = vunpack.c.l.b16 %v387
      %v753 = vunpack.c.h.b16 %v387
      %v754 = vunpack.c.l.b16 %v388
      %v755 = vunpack.c.h.b16 %v388
      %v756 = vunpack.c.l.b16 %v389
      %v757 = vunpack.c.h.b16 %v389
      %v758 = vunpack.c.l.b16 %v390
      %v759 = vunpack.c.h.b16 %v390
      %v760 = vunpack.c.l.b16 %v391
      %v761 = vunpack.c.h.b16 %v391
      %v762 = vunpack.c.l.b16 %v392
      %v763 = vunpack.c.h.b16 %v392
      %v764 = vunpack.c.l.b16 %v393
      %v765 = vunpack.c.h.b16 %v393
      %v766 = vunpack.c.l.b16 %v394
      %v767 = vunpack.c.h.b16 %v394
      %v768 = vunpack.c.l.b16 %v395
      %v769 = vunpack.c.h.b16 %v395
      %v770 = vunpack.c.l.b16 %v396
      %v771 = vunpack.c.h.b16 %v396
      %v772 = vunpack.c.l.b16 %v397
      %v773 = vunpack.c.h.b16 %v397
      %v774 = vunpack.c.l.b16 %v398
      %v775 = vunpack.c.h.b16 %v398
      %v776 = vunpack.c.l.b16 %v399
      %v777 = vunpack.c.h.b16 %v399
      %v778 = vunpack.c.l.b16 %v400
      %v779 = vunpack.c.h.b16 %v400
      %v780 = vunpack.c.l.b16 %v401
      %v781 = vunpack.c.h.b16 %v401
      %v782 = vunpack.c.l.b16 %v402
      %v783 = vunpack.c.h.b16 %v402
      %v784 = vunpack.c.l.b16 %v403
      %v785 = vunpack.c.h.b16 %v403
      %v786 = vunpack.c.l.b16 %v404
      %v787 = vunpack.c.h.b16 %v404
      %v788 = vunpack.c.l.b16 %v405
      %v789 = vunpack.c.h.b16 %v405
      %v790 = vunpack.c.l.b16 %v406
      %v791 = vunpack.c.h.b16 %v406
      %v792 = vunpack.c.l.b16 %v407
      %v793 = vunpack.c.h.b16 %v407
      %v794 = vunpack.c.l.b16 %v408
      %v795 = vunpack.c.h.b16 %v408
      %v796 = vunpack.c.l.b16 %v409
      %v797 = vunpack.c.h.b16 %v409
      %v798 = vunpack.c.l.b16 %v410
      %v799 = vunpack.c.h.b16 %v410
      %v800 = vunpack.c.l.b16 %v411
      %v801 = vunpack.c.h.b16 %v411
      %v802 = vunpack.c.l.b16 %v412
      %v803 = vunpack.c.h.b16 %v412
      %v804 = vunpack.c.l.b16 %v413
      %v805 = vunpack.c.h.b16 %v413
      %v806 = vunpack.c.l.b16 %v414
      %v807 = vunpack.c.h.b16 %v414
      %v808 = vunpack.c.l.b16 %v415
      %v809 = vunpack.c.h.b16 %v415
      %v810 = vunpack.c.l.b16 %v416
      %v811 = vunpack.c.h.b16 %v416
      %v812 = vunpack.c.l.b16 %v417
      %v813 = vunpack.c.h.b16 %v417
      %v814 = vunpack.c.l.b16 %v418
      %v815 = vunpack.c.h.b16 %v418
      %v816 = vunpack.c.l.b16 %v419
      %v817 = vunpack.c.h.b16 %v419
      %v818 = vpack.c.b16 %v566, %v562
      %v819 = vpack.c.b16 %v567, %v563
      %v820 = vpack.c.b16 %v568, %v564
      %v821 = vpack.c.b16 %v569, %v565
      %v822 = vpack.c.b16 %v574, %v570
      %v823 = vpack.c.b16 %v575, %v571
      %v824 = vpack.c.b16 %v576, %v572
      %v825 = vpack.c.b16 %v577, %v573
      %v826 = vpack.c.b16 %v582, %v578
      %v827 = vpack.c.b16 %v583, %v579
      %v828 = vpack.c.b16 %v584, %v580
      %v829 = vpack.c.b16 %v585, %v581
      %v830 = vpack.c.b16 %v590, %v586
      %v831 = vpack.c.b16 %v591, %v587
      %v832 = vpack.c.b16 %v592, %v588
      %v833 = vpack.c.b16 %v593, %v589
      %v834 = vpack.c.b16 %v598, %v594
      %v835 = vpack.c.b16 %v599, %v595
      %v836 = vpack.c.b16 %v600, %v596
      %v837 = vpack.c.b16 %v601, %v597
      %v838 = vpack.c.b16 %v606, %v602
      %v839 = vpack.c.b16 %v607, %v603
      %v840 = vpack.c.b16 %v608, %v604
      %v841 = vpack.c.b16 %v609, %v605
      %v842 = vpack.c.b16 %v614, %v610
      %v843 = vpack.c.b16 %v615, %v611
      %v844 = vpack.c.b16 %v616, %v612
      %v845 = vpack.c.b16 %v617, %v613
      %v846 = vpack.c.b16 %v622, %v618
      %v847 = vpack.c.b16 %v623, %v619
      %v848 = vpack.c.b16 %v624, %v620
      %v849 = vpack.c.b16 %v625, %v621
      %v850 = vpack.c.b16 %v630, %v626
      %v851 = vpack.c.b16 %v631, %v627
      %v852 = vpack.c.b16 %v632, %v628
      %v853 = vpack.c.b16 %v633, %v629
      %v854 = vpack.c.b16 %v638, %v634
      %v855 = vpack.c.b16 %v639, %v635
      %v856 = vpack.c.b16 %v640, %v636
      %v857 = vpack.c.b16 %v641, %v637
      %v858 = vpack.c.b16 %v646, %v642
      %v859 = vpack.c.b16 %v647, %v643
      %v860 = vpack.c.b16 %v648, %v644
      %v861 = vpack.c.b16 %v649, %v645
      %v862 = vpack.c.b16 %v654, %v650
      %v863 = vpack.c.b16 %v655, %v651
      %v864 = vpack.c.b16 %v656, %v652
      %v865 = vpack.c.b16 %v657, %v653
      %v866 = vpack.c.b16 %v662, %v658
      %v867 = vpack.c.b16 %v663, %v659
      %v868 = vpack.c.b16 %v664, %v660
      %v869 = vpack.c.b16 %v665, %v661
      %v870 = vpack.c.b16 %v670, %v666
      %v871 = vpack.c.b16 %v671, %v667
      %v872 = vpack.c.b16 %v672, %v668
      %v873 = vpack.c.b16 %v673, %v669
      %v874 = vpack.c.b16 %v678, %v674
      %v875 = vpack.c.b16 %v679, %v675
      %v876 = vpack.c.b16 %v680, %v676
      %v877 = vpack.c.b16 %v681, %v677
      %v878 = vpack.c.b16 %v686, %v682
      %v879 = vpack.c.b16 %v687, %v683
      %v880 = vpack.c.b16 %v688, %v684
      %v881 = vpack.c.b16 %v689, %v685
      %v882 = vpack.c.b16 %v694, %v690
      %v883 = vpack.c.b16 %v695, %v691
      %v884 = vpack.c.b16 %v696, %v692
      %v885 = vpack.c.b16 %v697, %v693
      %v886 = vpack.c.b16 %v702, %v698
      %v887 = vpack.c.b16 %v703, %v699
      %v888 = vpack.c.b16 %v704, %v700
      %v889 = vpack.c.b16 %v705, %v701
      %v890 = vpack.c.b16 %v710, %v706
      %v891 = vpack.c.b16 %v711, %v707
      %v892 = vpack.c.b16 %v712, %v708
      %v893 = vpack.c.b16 %v713, %v709
      %v894 = vpack.c.b16 %v718, %v714
      %v895 = vpack.c.b16 %v719, %v715
      %v896 = vpack.c.b16 %v720, %v716
      %v897 = vpack.c.b16 %v721, %v717
      %v898 = vpack.c.b16 %v726, %v722
      %v899 = vpack.c.b16 %v727, %v723
      %v900 = vpack.c.b16 %v728, %v724
      %v901 = vpack.c.b16 %v729, %v725
      %v902 = vpack.c.b16 %v734, %v730
      %v903 = vpack.c.b16 %v735, %v731
      %v904 = vpack.c.b16 %v736, %v732
      %v905 = vpack.c.b16 %v737, %v733
      %v906 = vpack.c.b16 %v742, %v738
      %v907 = vpack.c.b16 %v743, %v739
      %v908 = vpack.c.b16 %v744, %v740
      %v909 = vpack.c.b16 %v745, %v741
      %v910 = vpack.c.b16 %v750, %v746
      %v911 = vpack.c.b16 %v751, %v747
      %v912 = vpack.c.b16 %v752, %v748
      %v913 = vpack.c.b16 %v753, %v749
      %v914 = vpack.c.b16 %v758, %v754
      %v915 = vpack.c.b16 %v759, %v755
      %v916 = vpack.c.b16 %v760, %v756
      %v917 = vpack.c.b16 %v761, %v757
      %v918 = vpack.c.b16 %v766, %v762
      %v919 = vpack.c.b16 %v767, %v763
      %v920 = vpack.c.b16 %v768, %v764
      %v921 = vpack.c.b16 %v769, %v765
      %v922 = vpack.c.b16 %v774, %v770
      %v923 = vpack.c.b16 %v775, %v771
      %v924 = vpack.c.b16 %v776, %v772
      %v925 = vpack.c.b16 %v777, %v773
      %v926 = vpack.c.b16 %v782, %v778
      %v927 = vpack.c.b16 %v783, %v779
      %v928 = vpack.c.b16 %v784, %v780
      %v929 = vpack.c.b16 %v785, %v781
      %v930 = vpack.c.b16 %v790, %v786
      %v931 = vpack.c.b16 %v791, %v787
      %v932 = vpack.c.b16 %v792, %v788
      %v933 = vpack.c.b16 %v793, %v789
      %v934 = vpack.c.b16 %v798, %v794
      %v935 = vpack.c.b16 %v799, %v795
      %v936 = vpack.c.b16 %v800, %v796
      %v937 = vpack.c.b16 %v801, %v797
      %v938 = vpack.c.b16 %v806, %v802
      %v939 = vpack.c.b16 %v807, %v803
      %v940 = vpack.c.b16 %v808, %v804
      %v941 = vpack.c.b16 %v809, %v805
      %v942 = vpack.c.b16 %v814, %v810
      %v943 = vpack.c.b16 %v815, %v811
      %v944 = vpack.c.b16 %v816, %v812
      %v945 = vpack.c.b16 %v817, %v813
      %1074 = vmatprep.subr.bf16.mxu0 %v819
      %1075 = vmatpush1.bf16.msra.mxu0 %v818
      %1076 = vmatprep.subr.bf16.mxu0 %v823
      %1077 = vmatpush1.bf16.msra.mxu0 %v822
      %1078 = vmatprep.subr.bf16.mxu0 %v827
      %1079 = vmatpush1.bf16.msra.mxu0 %v826
      %1080 = vmatprep.subr.bf16.mxu0 %v831
      %1081 = vmatpush1.bf16.msra.mxu0 %v830
      %1082 = vmatprep.subr.bf16.mxu0 %v835
      %1083 = vmatpush1.bf16.msra.mxu0 %v834
      %1084 = vmatprep.subr.bf16.mxu0 %v839
      %1085 = vmatpush1.bf16.msra.mxu0 %v838
      %1086 = vmatprep.subr.bf16.mxu0 %v843
      %1087 = vmatpush1.bf16.msra.mxu0 %v842
      %1088 = vmatprep.subr.bf16.mxu0 %v847
      %1089 = vmatpush1.bf16.msra.mxu0 %v846
      %1090 = vmatprep.subr.bf16.mxu0 %v851
      %1091 = vmatpush1.bf16.msra.mxu0 %v850
      %1092 = vmatprep.subr.bf16.mxu0 %v855
      %1093 = vmatpush1.bf16.msra.mxu0 %v854
      %1094 = vmatprep.subr.bf16.mxu0 %v859
      %1095 = vmatpush1.bf16.msra.mxu0 %v858
      %1096 = vmatprep.subr.bf16.mxu0 %v863
      %1097 = vmatpush1.bf16.msra.mxu0 %v862
      %1098 = vmatprep.subr.bf16.mxu0 %v867
      %1099 = vmatpush1.bf16.msra.mxu0 %v866
      %1100 = vmatprep.subr.bf16.mxu0 %v871
      %1101 = vmatpush1.bf16.msra.mxu0 %v870
      %1102 = vmatprep.subr.bf16.mxu0 %v875
      %1103 = vmatpush1.bf16.msra.mxu0 %v874
      %1104 = vmatprep.subr.bf16.mxu0 %v879
      %1105 = vmatpush1.bf16.msra.mxu0 %v878
      %1106 = vmatprep.mubr.bf16.mxu0 %v427
      %1107 = vmatmul.mubr.bf16.gmra.mrb[0].mxu0 %v426
      %v1108 = vpop.f32.mrb[0].mxu0
      %v1109 = vadd.f32 0.0, %v1108
      %v1110 = vpop.f32.mrb[0].mxu0
      %v1111 = vadd.f32 0.0, %v1110
      %v1112 = vpop.f32.mrb[0].mxu0
      %v1113 = vpop.f32.mrb[0].mxu0
      %1114 = vdwg.mxu0
      %1115 = vmatprep.subr.bf16.mxu0 %v883
      %1116 = vmatpush1.bf16.msra.mxu0 %v882
      %1117 = vmatprep.subr.bf16.mxu0 %v887
      %1118 = vmatpush1.bf16.msra.mxu0 %v886
      %1119 = vmatprep.subr.bf16.mxu0 %v891
      %1120 = vmatpush1.bf16.msra.mxu0 %v890
      %1121 = vmatprep.subr.bf16.mxu0 %v895
      %1122 = vmatpush1.bf16.msra.mxu0 %v894
      %1123 = vmatprep.subr.bf16.mxu0 %v899
      %1124 = vmatpush1.bf16.msra.mxu0 %v898
      %1125 = vmatprep.subr.bf16.mxu0 %v903
      %1126 = vmatpush1.bf16.msra.mxu0 %v902
      %1127 = vmatprep.subr.bf16.mxu0 %v907
      %1128 = vmatpush1.bf16.msra.mxu0 %v906
      %1129 = vmatprep.subr.bf16.mxu0 %v911
      %1130 = vmatpush1.bf16.msra.mxu0 %v910
      %1131 = vmatprep.subr.bf16.mxu0 %v915
      %1132 = vmatpush1.bf16.msra.mxu0 %v914
      %1133 = vmatprep.subr.bf16.mxu0 %v919
      %1134 = vmatpush1.bf16.msra.mxu0 %v918
      %1135 = vmatprep.subr.bf16.mxu0 %v923
      %1136 = vmatpush1.bf16.msra.mxu0 %v922
      %1137 = vmatprep.subr.bf16.mxu0 %v927
      %1138 = vmatpush1.bf16.msra.mxu0 %v926
      %1139 = vmatprep.subr.bf16.mxu0 %v931
      %1140 = vmatpush1.bf16.msra.mxu0 %v930
      %1141 = vmatprep.subr.bf16.mxu0 %v935
      %1142 = vmatpush1.bf16.msra.mxu0 %v934
      %1143 = vmatprep.subr.bf16.mxu0 %v939
      %1144 = vmatpush1.bf16.msra.mxu0 %v938
      %1145 = vmatprep.subr.bf16.mxu0 %v943
      %1146 = vmatpush1.bf16.msra.mxu0 %v942
      %1147 = vmatprep.mubr.bf16.mxu0 %v429
      %1148 = vmatmul.mubr.bf16.gmra.mrb[0].mxu0 %v428
      %v1149 = vpop.f32.mrb[0].mxu0
      %v1150 = vadd.f32 %v1109, %v1149
      %v1151 = vpop.f32.mrb[0].mxu0
      %v1152 = vadd.f32 %v1111, %v1151
      %v1153 = vpop.f32.mrb[0].mxu0
      %v1154 = vpop.f32.mrb[0].mxu0
      %1155 = vdwg.mxu0
      %1156 = vmatprep.subr.bf16.mxu0 %v821
      %1157 = vmatpush1.bf16.msra.mxu0 %v820
      %1158 = vmatprep.subr.bf16.mxu0 %v825
      %1159 = vmatpush1.bf16.msra.mxu0 %v824
      %1160 = vmatprep.subr.bf16.mxu0 %v829
      %1161 = vmatpush1.bf16.msra.mxu0 %v828
      %1162 = vmatprep.subr.bf16.mxu0 %v833
      %1163 = vmatpush1.bf16.msra.mxu0 %v832
      %1164 = vmatprep.subr.bf16.mxu0 %v837
      %1165 = vmatpush1.bf16.msra.mxu0 %v836
      %1166 = vmatprep.subr.bf16.mxu0 %v841
      %1167 = vmatpush1.bf16.msra.mxu0 %v840
      %1168 = vmatprep.subr.bf16.mxu0 %v845
      %1169 = vmatpush1.bf16.msra.mxu0 %v844
      %1170 = vmatprep.subr.bf16.mxu0 %v849
      %1171 = vmatpush1.bf16.msra.mxu0 %v848
      %1172 = vmatprep.subr.bf16.mxu0 %v853
      %1173 = vmatpush1.bf16.msra.mxu0 %v852
      %1174 = vmatprep.subr.bf16.mxu0 %v857
      %1175 = vmatpush1.bf16.msra.mxu0 %v856
      %1176 = vmatprep.subr.bf16.mxu0 %v861
      %1177 = vmatpush1.bf16.msra.mxu0 %v860
      %1178 = vmatprep.subr.bf16.mxu0 %v865
      %1179 = vmatpush1.bf16.msra.mxu0 %v864
      %1180 = vmatprep.subr.bf16.mxu0 %v869
      %1181 = vmatpush1.bf16.msra.mxu0 %v868
      %1182 = vmatprep.subr.bf16.mxu0 %v873
      %1183 = vmatpush1.bf16.msra.mxu0 %v872
      %1184 = vmatprep.subr.bf16.mxu0 %v877
      %1185 = vmatpush1.bf16.msra.mxu0 %v876
      %1186 = vmatprep.subr.bf16.mxu0 %v881
      %1187 = vmatpush1.bf16.msra.mxu0 %v880
      %1188 = vmatprep.mubr.bf16.mxu0 %v427
      %1189 = vmatmul.mubr.bf16.gmra.mrb[0].mxu0 %v426
      %v1190 = vpop.f32.mrb[0].mxu0
      %v1191 = vadd.f32 0.0, %v1190
      %v1192 = vpop.f32.mrb[0].mxu0
      %v1193 = vadd.f32 0.0, %v1192
      %v1194 = vpop.f32.mrb[0].mxu0
      %v1195 = vpop.f32.mrb[0].mxu0
      %1196 = vdwg.mxu0
      %1197 = vmatprep.subr.bf16.mxu0 %v885
      %1198 = vmatpush1.bf16.msra.mxu0 %v884
      %1199 = vmatprep.subr.bf16.mxu0 %v889
      %1200 = vmatpush1.bf16.msra.mxu0 %v888
      %1201 = vmatprep.subr.bf16.mxu0 %v893
      %1202 = vmatpush1.bf16.msra.mxu0 %v892
      %1203 = vmatprep.subr.bf16.mxu0 %v897
      %1204 = vmatpush1.bf16.msra.mxu0 %v896
      %1205 = vmatprep.subr.bf16.mxu0 %v901
      %1206 = vmatpush1.bf16.msra.mxu0 %v900
      %1207 = vmatprep.subr.bf16.mxu0 %v905
      %1208 = vmatpush1.bf16.msra.mxu0 %v904
      %1209 = vmatprep.subr.bf16.mxu0 %v909
      %1210 = vmatpush1.bf16.msra.mxu0 %v908
      %1211 = vmatprep.subr.bf16.mxu0 %v913
      %1212 = vmatpush1.bf16.msra.mxu0 %v912
      %1213 = vmatprep.subr.bf16.mxu0 %v917
      %1214 = vmatpush1.bf16.msra.mxu0 %v916
      %1215 = vmatprep.subr.bf16.mxu0 %v921
      %1216 = vmatpush1.bf16.msra.mxu0 %v920
      %1217 = vmatprep.subr.bf16.mxu0 %v925
      %1218 = vmatpush1.bf16.msra.mxu0 %v924
      %1219 = vmatprep.subr.bf16.mxu0 %v929
      %1220 = vmatpush1.bf16.msra.mxu0 %v928
      %1221 = vmatprep.subr.bf16.mxu0 %v933
      %1222 = vmatpush1.bf16.msra.mxu0 %v932
      %1223 = vmatprep.subr.bf16.mxu0 %v937
      %1224 = vmatpush1.bf16.msra.mxu0 %v936
      %1225 = vmatprep.subr.bf16.mxu0 %v941
      %1226 = vmatpush1.bf16.msra.mxu0 %v940
      %1227 = vmatprep.subr.bf16.mxu0 %v945
      %1228 = vmatpush1.bf16.msra.mxu0 %v944
      %1229 = vmatprep.mubr.bf16.mxu0 %v429
      %1230 = vmatmul.mubr.bf16.gmra.mrb[0].mxu0 %v428
      %v1231 = vpop.f32.mrb[0].mxu0
      %v1232 = vadd.f32 %v1191, %v1231
      %v1233 = vpop.f32.mrb[0].mxu0
      %v1234 = vadd.f32 %v1193, %v1233
      %v1235 = vpop.f32.mrb[0].mxu0
      %v1236 = vpop.f32.mrb[0].mxu0
      %1237 = vdwg.mxu0
      %v1238 = vadd.f32 %v286, %v1150
      %v1239 = vadd.f32 %v287, %v1152
      %v1240 = vadd.f32 %v288, %v1232
      %v1241 = vadd.f32 %v289, %v1234
      %1242 = vst [vmem:[#allocation2] sm:$0xff] %v1238
      %1243 = vst [vmem:[#allocation2 + $0x8] sm:$0xff] %v1239
      %1244 = vst [vmem:[#allocation2 + $0x10] sm:$0xff] %v1240
      %1245 = vst [vmem:[#allocation2 + $0x18] sm:$0xff] %v1241
      %p1246 = scmp.eq.s32.totalorder %s23, 1
      // Predicated region
      $region45: #{fcn_forward.1} parent=39 // pred_check
        %p1247 = pneg %p1246
      $region46: #{fcn_forward.1} parent=39 // pred_check_branch
        %1249 = sbr.rel (%p1247) target = $region48
      $region47: #{fcn_forward.1} parent=39 // pred_region
        %v1250 = vld [vmem:[#allocation2] sm:$0xff]
        %v1251 = vld [vmem:[#allocation2 + $0x8] sm:$0xff]
        %v1252 = vld [vmem:[#allocation2 + $0x10] sm:$0xff]
        %v1253 = vld [vmem:[#allocation2 + $0x18] sm:$0xff]
        %v1254 = vld [vmem:[%s2] sm:$0xf]
        %v1256 = vlaneseq
        %v1257 = vshrl.u32 %v1256, 7
        %v1258 = vsub.s32 0, %v1257
        %v1259 = vrot.slane %v1254, %v1258
        %v1260 = vlaneseq
        %v1261 = vshrl.u32 %v1260, 7
        %v1262 = vsub.s32 1, %v1261
        %v1263 = vrot.slane %v1254, %v1262
        %v1264 = vlaneseq
        %v1265 = vshrl.u32 %v1264, 7
        %v1266 = vsub.s32 2, %v1265
        %v1267 = vrot.slane %v1254, %v1266
        %v1268 = vlaneseq
        %v1269 = vshrl.u32 %v1268, 7
        %v1270 = vsub.s32 3, %v1269
        %v1271 = vrot.slane %v1254, %v1270
        %v1276 = vadd.f32 %v1250, %v1259
        %v1277 = vadd.f32 %v1251, %v1263
        %v1278 = vadd.f32 %v1252, %v1267
        %v1279 = vadd.f32 %v1253, %v1271
        %v1280 = vmax.f32 %v1276, 0.0
        %v1281 = vmax.f32 %v1277, 0.0
        %v1282 = vmax.f32 %v1278, 0.0
        %v1283 = vmax.f32 %v1279, 0.0
        %v1284 = vld [vmem:[%s3] sm:$0xf]
        %v1286 = vlaneseq
        %v1287 = vshrl.u32 %v1286, 7
        %v1288 = vsub.s32 0, %v1287
        %v1289 = vrot.slane %v1284, %v1288
        %v1290 = vlaneseq
        %v1291 = vshrl.u32 %v1290, 7
        %v1292 = vsub.s32 1, %v1291
        %v1293 = vrot.slane %v1284, %v1292
        %v1294 = vlaneseq
        %v1295 = vshrl.u32 %v1294, 7
        %v1296 = vsub.s32 2, %v1295
        %v1297 = vrot.slane %v1284, %v1296
        %v1298 = vlaneseq
        %v1299 = vshrl.u32 %v1298, 7
        %v1300 = vsub.s32 3, %v1299
        %v1301 = vrot.slane %v1284, %v1300
        %v1306 = vmul.f32 %v1280, %v1289
        %v1307 = vmul.f32 %v1281, %v1293
        %v1308 = vmul.f32 %v1282, %v1297
        %v1309 = vmul.f32 %v1283, %v1301
        %v1310 = vadd.f32 %v1306, %v1307
        %v1311 = vadd.f32 %v1310, %v1308
        %v1312 = vadd.f32 %v1311, %v1309
        %1313 = vadd.xlane.f32.xlu0 %v1312
        %v1314 = vpop.xlane.xlu0 %1313
        %v1315 = vld [vmem:[#allocation3] sm:$0x1]
        %v1317 = vlaneseq
        %v1318 = vshrl.u32 %v1317, 7
        %v1319 = vsub.s32 0, %v1318
        %v1320 = vrot.slane %v1315, %v1319
        %v1322 = vadd.f32 %v1314, %v1320
        %vm1323 = vcmask 7168
        %1324 = vst.msk [vmem:[%s277] sm:$0xff] %vm1323, %v1322
      $region48: #{fcn_forward.1} parent=39 // pred_fallthru
        _
      %p1325 = scmp.lt.s32.totalorder %s22, 0
      %s1326 = scalar_select %p1325, %s22, 0
      %s1327 = smul.addr %s1326, 8
      %s1328 = scalar_lea.vmem %s5, %s1327
      // Predicated region
      $region49: #{fcn_forward.1} parent=39 // pred_check
        %p1329 = pneg %p165
      $region50: #{fcn_forward.1} parent=39 // pred_check_branch
        %1331 = sbr.rel (%p1329) target = $region52
      $region51: #{fcn_forward.1} parent=39 // pred_region
        _
      $region52: #{fcn_forward.1} parent=39 // pred_fallthru
        _
      // Predicated region
      $region53: #{fcn_forward.1} parent=39 // pred_check
        %p1332 = pneg %p165
      $region54: #{fcn_forward.1} parent=39 // pred_check_branch
        %1334 = sbr.rel (%p1332) target = $region56
      $region55: #{fcn_forward.1} parent=39 // pred_region
        %p1335 = scmp.lt.s32.totalorder %s22, 0
        %s1336 = scalar_select %p1335, %s22, 0
        %s1337 = smul.addr %s1336, 8
        %s1338 = scalar_lea.vmem %s5, %s1337
      $region56: #{fcn_forward.1} parent=39 // pred_fallthru
        _
    $region40: #{fcn_forward.1} parent=5 // pred_fallthru
      _
    %p1339 = scmp.le.s32.totalorder 2, %s13
    // Predicated region
    $region57: #{fcn_forward.1} parent=5 // pred_check
      %p1340 = pneg %p1339
    $region58: #{fcn_forward.1} parent=5 // pred_check_branch
      %1342 = sbr.rel (%p1340) target = $region60
    $region59: #{fcn_forward.1} parent=5 // pred_region
      %s1343 = ssub.s32 %s13, 2
    $region60: #{fcn_forward.1} parent=5 // pred_fallthru
      _
  $region6: #{fcn_forward.1} parent=0 // loop_footer
    %s17 = sadd.s32 1, %s13
  $region7: #{fcn_forward.1} parent=0 // loop_footer_branch
    %12 = sbr.rel target = $region3
  $region8: #{fcn_forward.1} parent=0 // loop_exit
    _

</llo_original>
